<compile_context>
chip_gen: v5e
topology: v5e:2x2
jax: 0.10.0
libtpu: 0.0.40
codegen_flags: <defaults>
</compile_context>

<pallas_src>
import numpy as np
import jax
import jax.numpy as jnp
from jax.experimental import pallas as pl
from jax.experimental.pallas import tpu as pltpu

# ---------------- Martini tables (protein subset) ----------------
PSEUDOATOM_TYPES = {
    'ALA': ['P4'], 'CYS': ['P5', 'C5'], 'ASP': ['P5', 'Qa'], 'GLU': ['P5', 'Qa'],
    'PHE': ['P5', 'SC4', 'SC4', 'SC4'], 'GLY': ['P5'], 'HIS': ['P5', 'SC4', 'SP1', 'SP1'],
    'ILE': ['P5', 'AC1'], 'LYS': ['P5', 'C3', 'P1'], 'LEU': ['P5', 'AC1'],
    'MET': ['P5', 'C5'], 'ASN': ['P5', 'P5'], 'PRO': ['P5', 'AC2'], 'GLN': ['P5', 'P4'],
    'ARG': ['P5', 'N0', 'Qd'], 'SER': ['P5', 'P1'], 'THR': ['P5', 'P1'],
    'VAL': ['P5', 'AC2'], 'TRP': ['P5', 'SC4', 'SP1', 'SC4', 'SC4'],
    'TYR': ['P5', 'SC4', 'SC4', 'SP1'],
}
PSEUDOATOM_RADII = {'P5': 4.7, 'AC1': 4.7, 'C5': 4.7, 'SP1': 4.7, 'N0': 4.7, 'AC2': 4.7,
                    'C3': 4.7, 'P1': 4.7, 'Qa': 4.7, 'P4': 4.7, 'Qd': 4.7, 'SC4': 4.7}
PSEUDOATOM_WEIGHTS = {'P5': 72.0, 'AC1': 72.0, 'C5': 72.0, 'SP1': 45.0, 'N0': 72.0,
                      'AC2': 72.0, 'C3': 72.0, 'P1': 72.0, 'Qa': 72.0, 'P4': 72.0,
                      'Qd': 72.0, 'SC4': 45.0}
NUM2AA = ['ALA', 'ARG', 'ASN', 'ASP', 'CYS', 'GLN', 'GLU', 'GLY', 'HIS', 'ILE',
          'LEU', 'LYS', 'MET', 'PHE', 'PRO', 'SER', 'THR', 'TRP', 'TYR', 'VAL']

NUM_AA = len(NUM2AA)                                       # 20
NUM_PSEUDO = max(len(PSEUDOATOM_TYPES[a]) for a in NUM2AA) # 5
_NUM2PS = sorted({t for a in NUM2AA for t in PSEUDOATOM_TYPES[a]})
NUM_TYPES = len(_NUM2PS)                                   # 12
EPS_RIGID = 1e-8
assert NUM_PSEUDO <= 8


def _round_up(n, m):
    return -(-n // m) * m


# Row layout of the packed map / fused output slab.
ROW_X, ROW_Y, ROW_Z, ROW_R, ROW_W = 0, 8, 16, 24, 32
ROW_T = 40
TYPE_BLOCK_ROWS = _round_up(NUM_PSEUDO * NUM_TYPES, 8)     # 64
F_PAD = ROW_T + TYPE_BLOCK_ROWS                            # 104
assert NUM_PSEUDO * NUM_TYPES <= TYPE_BLOCK_ROWS
assert F_PAD % 8 == 0


# ---------------- parameter construction (deterministic, numpy glue) ----------------
def build_maps(key):
    """Replicates BB2Martini.__init__ padding logic.

    # TODO(synk): the original derives pseudoatom center-of-mass coords from
    # `ideal_coords` (residue geometry tables not shipped with the module); the
    # coordinates are synthesized deterministically here instead.
    """
    ps2num = {t: i for i, t in enumerate(_NUM2PS)}
    synth = np.asarray(jax.random.normal(key, (NUM_AA, NUM_PSEUDO, 3), jnp.float32)) * 2.0

    map_coords = np.zeros((NUM_AA, NUM_PSEUDO, 3), np.float32)
    map_types = np.zeros((NUM_AA, NUM_PSEUDO, NUM_TYPES), np.float32)
    map_weights = np.zeros((NUM_AA, NUM_PSEUDO), np.float32)
    map_radii = np.zeros((NUM_AA, NUM_PSEUDO), np.float32)

    for i, aa in enumerate(NUM2AA):
        tnames = PSEUDOATOM_TYPES[aa]
        n = len(tnames)
        ps = [list(synth[i, j]) for j in range(n)]
        ts = [ps2num[t] for t in tnames]
        rs = [PSEUDOATOM_RADII[t] for t in tnames]
        ws = [PSEUDOATOM_WEIGHTS[t] for t in tnames]
        to_add = NUM_PSEUDO - n
        for _ in range(to_add):
            ps = [ps[0]] + ps
            ts = [ts[0]] + ts
            rs = [rs[0]] + rs
            ws = [ws[0]] + ws
        for j in range(to_add):
            ws[j] /= (to_add + 1)
        map_coords[i] = np.array(ps, np.float32)
        for j, t in enumerate(ts):
            map_types[i, j, t] = 1.0
        map_weights[i] = np.array(ws, np.float32)
        map_radii[i] = np.array(rs, np.float32)
    return map_coords, map_types, map_weights, map_radii


def pack_kernel_params(map_coords, map_types, map_weights, map_radii):
    """Pack the weighted maps into the transposed [F_PAD, A] matrix and the
    constant [64, 8] inv-weight replication matrix used by the kernel."""
    A, P, _ = map_coords.shape
    T = map_types.shape[-1]

    m = np.zeros((F_PAD, A), np.float32)
    cw = map_coords * map_weights[..., None]          # [A, P, 3]
    tw = map_types * map_weights[..., None]           # [A, P, T]
    rw = map_radii * map_weights                      # [A, P]
    for p in range(P):
        m[ROW_X + p] = cw[:, p, 0]
        m[ROW_Y + p] = cw[:, p, 1]
        m[ROW_Z + p] = cw[:, p, 2]
        m[ROW_R + p] = rw[:, p]
        m[ROW_W + p] = map_weights[:, p]
        for t in range(T):
            m[ROW_T + T * p + t] = tw[:, p, t]
    # Sublane-pad rows of the weight group carry 1.0 so every 8-row group can be
    # scaled by inv_w with full unmasked stores (pad rows of valid lanes stay finite).
    for p in range(P, 8):
        m[ROW_W + p] = 1.0

    rep = np.zeros((TYPE_BLOCK_ROWS, 8), np.float32)
    for p in range(P):
        for t in range(T):
            rep[T * p + t, p] = 1.0
    return jnp.asarray(m, jnp.float32), jnp.asarray(rep, jnp.float32)


# ---------------- Pallas kernel ----------------
def _recip(x):
    """Reciprocal on the EUP slot (approx) + one Newton step (~1e-6 rel error)."""
    r = pl.reciprocal(x, approx=True)
    return r * (2.0 - x * r)


def bb2martini_kernel(seq_ref, bb_ref, map_ref, rep_ref, out_ref):
    seq = seq_ref[...]                                             # [A, tl]

    # Weighted sums over the amino-acid axis, split into two dots whose results
    # feed the scaled stores directly (no full-slab accumulator round trip).
    acc_g = jnp.dot(map_ref[0:ROW_T, :], seq,
                    preferred_element_type=jnp.float32)            # [40, tl]
    acc_t = jnp.dot(map_ref[ROW_T:F_PAD, :], seq,
                    preferred_element_type=jnp.float32)            # [64, tl]

    w8 = acc_g[ROW_W:ROW_W + 8, :]        # rows 5..7 are 1.0 on valid lanes
    inv_w8 = _recip(w8)                   # Inf/NaN only on all-zero padded lanes

    x8 = acc_g[ROW_X:ROW_X + 8, :] * inv_w8   # local center-of-mass coords
    y8 = acc_g[ROW_Y:ROW_Y + 8, :] * inv_w8
    z8 = acc_g[ROW_Z:ROW_Z + 8, :] * inv_w8

    # rigid_from_3_points(N, Ca, C); every component is a [1, tl] row (full lanes).
    bbv = bb_ref[...]
    nx, ny, nz = bbv[0:1, :], bbv[1:2, :], bbv[2:3, :]
    cax, cay, caz = bbv[3:4, :], bbv[4:5, :], bbv[5:6, :]
    cx, cy, cz = bbv[6:7, :], bbv[7:8, :], bbv[8:9, :]

    v1x, v1y, v1z = cx - cax, cy - cay, cz - caz
    v2x, v2y, v2z = nx - cax, ny - cay, nz - caz

    inv_n1 = _recip(jnp.sqrt(v1x * v1x + v1y * v1y + v1z * v1z) + EPS_RIGID)
    e1x, e1y, e1z = v1x * inv_n1, v1y * inv_n1, v1z * inv_n1

    d = e1x * v2x + e1y * v2y + e1z * v2z
    u2x, u2y, u2z = v2x - d * e1x, v2y - d * e1y, v2z - d * e1z
    inv_n2 = _recip(jnp.sqrt(u2x * u2x + u2y * u2y + u2z * u2z) + EPS_RIGID)
    e2x, e2y, e2z = u2x * inv_n2, u2y * inv_n2, u2z * inv_n2

    e3x = e1y * e2z - e1z * e2y
    e3y = e1z * e2x - e1x * e2z
    e3z = e1x * e2y - e1y * e2x

    # Rotated + translated pseudoatom coords.  All stores are full, unmasked,
    # 8-aligned sublane-group stores; no separate zero-fill pass.
    out_ref[ROW_X:ROW_X + 8, :] = x8 * e1x + y8 * e2x + z8 * e3x + cax
    out_ref[ROW_Y:ROW_Y + 8, :] = x8 * e1y + y8 * e2y + z8 * e3y + cay
    out_ref[ROW_Z:ROW_Z + 8, :] = x8 * e1z + y8 * e2z + z8 * e3z + caz
    out_ref[ROW_R:ROW_R + 8, :] = acc_g[ROW_R:ROW_R + 8, :] * inv_w8
    out_ref[ROW_W:ROW_W + 8, :] = w8

    # Replicate the 5 per-pseudoatom inverse weights over the 60 type rows with a
    # tiny constant matmul (MXU has huge slack), then store the whole 64-row type
    # block with one unmasked store.
    inv_w_rep = jnp.dot(rep_ref[...], inv_w8, preferred_element_type=jnp.float32)
    out_ref[ROW_T:ROW_T + TYPE_BLOCK_ROWS, :] = acc_t * inv_w_rep


# ---------------- tiling policy ----------------
def _choose_tile(n, max_tile=1024):
    """Lane tile (multiple of 128) and padded total length.

    Pads only to a multiple of 128 (never to multiples of the tile alone unless
    cheap) and prefers >= 2 grid steps so ("parallel",) can shard across both
    v7x TensorCores.  Cost model: one grid step ~0.35us ~= ~700 padded lanes of
    slab traffic.
    """
    n128 = _round_up(max(n, 1), 128)
    if n128 <= 128:
        return 128, 128
    best = None
    for tl in range(128, max_tile + 1, 128):
        lpad = _round_up(n128, tl)
        steps = lpad // tl
        if steps < 2:
            continue
        cost = steps * 700 + (lpad - n128)
        if best is None or cost < best[0]:
            best = (cost, tl, lpad)
    if best is None:
        return n128, n128
    return best[1], best[2]


# ---------------- jitted core (pallas_call + layout plumbing) ----------------
@jax.jit
def _bb2martini_core(seqs, bbs, map_mat_T, rep_mat):
    lens = tuple(int(s.shape[0]) for s in seqs)
    ltot = sum(lens)
    tl, lpad = _choose_tile(ltot)

    seq_all = jnp.concatenate([s.astype(jnp.float32) for s in seqs], axis=0)
    bb_all = jnp.concatenate(
        [b[:, :3, :].astype(jnp.float32).reshape(b.shape[0], 9) for b in bbs], axis=0)
    if lpad != ltot:
        seq_all = jnp.pad(seq_all, ((0, lpad - ltot), (0, 0)))
        bb_all = jnp.pad(bb_all, ((0, lpad - ltot), (0, 0)))

    seq_t = seq_all.T            # [A, lpad]   residues on lanes
    bb_t = bb_all.T              # [9, lpad]

    out_t = pl.pallas_call(
        bb2martini_kernel,
        out_shape=jax.ShapeDtypeStruct((F_PAD, lpad), jnp.float32),
        grid_spec=pltpu.PrefetchScalarGridSpec(
            num_scalar_prefetch=0,
            grid=(lpad // tl,),
            in_specs=[
                pl.BlockSpec((NUM_AA, tl), lambda i: (0, i)),
                pl.BlockSpec((9, tl), lambda i: (0, i)),
                pl.BlockSpec((F_PAD, NUM_AA), lambda i: (0, 0)),        # resident
                pl.BlockSpec((TYPE_BLOCK_ROWS, 8), lambda i: (0, 0)),   # resident
            ],
            out_specs=pl.BlockSpec((F_PAD, tl), lambda i: (0, i)),
        ),
        compiler_params=pltpu.CompilerParams(dimension_semantics=("parallel",)),
    )(seq_t, bb_t, map_mat_T, rep_mat)

    # Layout plumbing back to the PyTorch output conventions (fused inside jit).
    out = out_t.T[:ltot]                                              # [ltot, F_PAD]
    P, T = NUM_PSEUDO, NUM_TYPES
    xyz = jnp.stack([out[:, ROW_X:ROW_X + P],
                     out[:, ROW_Y:ROW_Y + P],
                     out[:, ROW_Z:ROW_Z + P]], axis=-1)               # [ltot, P, 3]
    types = out[:, ROW_T:ROW_T + P * T].reshape(ltot, P, T)           # p-major packing
    rad = out[:, ROW_R:ROW_R + P]
    wts = out[:, ROW_W:ROW_W + P]

    res = []
    off = 0
    for L in lens:
        res.append((xyz[off:off + L].reshape(L * P, 3),
                    types[off:off + L].reshape(L * P, T),
                    rad[off:off + L].reshape(-1),
                    wts[off:off + L].reshape(-1)))
        off += L
    return tuple(res)


def bb2martini_forward(data, map_mat_T, rep_mat, chains=('_p1', '_p2')):
    seqs = tuple(jnp.asarray(data[f'sequence{ch}'], jnp.float32) for ch in chains)
    bbs = tuple(jnp.asarray(data[f'bb_xyz{ch}'], jnp.float32) for ch in chains)
    outs = _bb2martini_core(seqs, bbs, map_mat_T, rep_mat)
    for ch, (xyz, types, rad, wts) in zip(chains, outs):
        data[f'atom_xyz{ch}'] = xyz
        data[f'atom_types{ch}'] = types
        data[f'atom_rad{ch}'] = rad
        data[f'atom_weights{ch}'] = wts
    return data


# ---------------- pure-JAX reference (for correctness check) ----------------
def reference_chain(seq, bb, mc, mt, mw, mr):
    s = seq[:, :, None, None]
    den = (s * mw[None, ..., None]).sum(1)                                   # [L,P,1]
    xyz = (s * mc[None] * mw[None, ..., None]).sum(1) / den                  # [L,P,3]
    types = (s * mt[None] * mw[None, ..., None]).sum(1) / den                # [L,P,T]
    radii = (s * mr[None, ..., None] * mw[None, ..., None]).sum(1) / den     # [L,P,1]
    N, Ca, C = bb[:, 0], bb[:, 1], bb[:, 2]
    v1, v2 = C - Ca, N - Ca
    e1 = v1 / (jnp.linalg.norm(v1, axis=-1, keepdims=True) + EPS_RIGID)
    u2 = v2 - jnp.sum(e1 * v2, -1, keepdims=True) * e1
    e2 = u2 / (jnp.linalg.norm(u2, axis=-1, keepdims=True) + EPS_RIGID)
    e3 = jnp.cross(e1, e2)
    R = jnp.stack([e1, e2, e3], axis=-1)
    out = jnp.einsum('lij,lpj->lpi', R, xyz) + Ca[:, None, :]
    return (out.reshape(-1, 3), types.reshape(-1, NUM_TYPES),
            radii.reshape(-1), den.reshape(-1))


if __name__ == "__main__":
    key = jax.random.PRNGKey(0)
    k_maps, k1, k2, k3, k4 = jax.random.split(key, 5)

    mc, mt, mw, mr = build_maps(k_maps)
    map_mat_T, rep_mat = pack_kernel_params(mc, mt, mw, mr)

    # Two chains, total 176 residues -> lpad=256, two 128-wide grid steps.
    data = {}
    for ch, L, ks, kb in (('_p1', 96, k1, k2), ('_p2', 80, k3, k4)):
        idx = jax.random.randint(ks, (L,), 0, NUM_AA)
        data[f'sequence{ch}'] = jax.nn.one_hot(idx, NUM_AA, dtype=jnp.float32)
        data[f'bb_xyz{ch}'] = jax.random.normal(kb, (L, 3, 3), jnp.float32) * 3.0

    data = bb2martini_forward(data, map_mat_T, rep_mat)
    jax.block_until_ready(data['atom_xyz_p2'])

    # correctness check vs pure-JAX reference
    mcj, mtj, mwj, mrj = map(jnp.asarray, (mc, mt, mw, mr))
    for ch in ('_p1', '_p2'):
        rx, rt, rr, rw_ = reference_chain(data[f'sequence{ch}'], data[f'bb_xyz{ch}'],
                                          mcj, mtj, mwj, mrj)
        np.testing.assert_allclose(np.asarray(data[f'atom_xyz{ch}']), np.asarray(rx),
                                   rtol=1e-4, atol=1e-4)
        np.testing.assert_allclose(np.asarray(data[f'atom_types{ch}']), np.asarray(rt),
                                   rtol=1e-4, atol=1e-4)
        np.testing.assert_allclose(np.asarray(data[f'atom_rad{ch}']), np.asarray(rr),
                                   rtol=1e-4, atol=1e-4)
        np.testing.assert_allclose(np.asarray(data[f'atom_weights{ch}']), np.asarray(rw_),
                                   rtol=1e-4, atol=1e-4)

    print("KERNEL_OK")
</pallas_src>

<mosaic_0001>
module attributes {stable_mosaic.version = 11 : i64} {
  func.func @bb2martini_kernel(%arg0: i32, %arg1: memref<20x128xf32, #tpu.memory_space<vmem>>, %arg2: memref<9x128xf32, #tpu.memory_space<vmem>>, %arg3: memref<104x20xf32, #tpu.memory_space<vmem>>, %arg4: memref<64x8xf32, #tpu.memory_space<vmem>>, %arg5: memref<104x128xf32, #tpu.memory_space<vmem>>) attributes {dimension_semantics = [#tpu.dimension_semantics<parallel>], iteration_bounds = array<i64: 2>, scalar_prefetch = 0 : i64, scratch_operands = 0 : i64, tpu.core_type = #tpu.core_type<tc>, window_params = [{transform_indices = @transform_0, window_bounds = array<i64: 20, 128>}, {transform_indices = @transform_1, window_bounds = array<i64: 9, 128>}, {pipeline_mode = #tpu.pipeline_mode<synchronous>, transform_indices = @transform_2, window_bounds = array<i64: 104, 20>}, {pipeline_mode = #tpu.pipeline_mode<synchronous>, transform_indices = @transform_3, window_bounds = array<i64: 64, 8>}, {transform_indices = @transform_4, window_bounds = array<i64: 104, 128>}]} {
    %c0 = arith.constant 0 : index
    %c0_0 = arith.constant 0 : index
    %0 = vector.load %arg1[%c0, %c0_0] : memref<20x128xf32, #tpu.memory_space<vmem>>, vector<20x128xf32>
    %c0_1 = arith.constant 0 : index
    %c0_2 = arith.constant 0 : index
    %1 = vector.load %arg3[%c0_1, %c0_2] : memref<104x20xf32, #tpu.memory_space<vmem>>, vector<40x20xf32>
    %cst = arith.constant dense<0.000000e+00> : vector<40x128xf32>
    %2 = tpu.matmul %1, %0, %cst {dimension_numbers = #tpu.dot_dimension_numbers<[1], [0], [0], [1], [0, 0, 1, 1], [], []>} : vector<40x20xf32>, vector<20x128xf32>, vector<40x128xf32> -> vector<40x128xf32>
    %c40 = arith.constant 40 : index
    %c0_3 = arith.constant 0 : index
    %3 = vector.load %arg3[%c40, %c0_3] : memref<104x20xf32, #tpu.memory_space<vmem>>, vector<64x20xf32>
    %cst_4 = arith.constant dense<0.000000e+00> : vector<64x128xf32>
    %4 = tpu.matmul %3, %0, %cst_4 {dimension_numbers = #tpu.dot_dimension_numbers<[1], [0], [0], [1], [0, 0, 1, 1], [], []>} : vector<64x20xf32>, vector<20x128xf32>, vector<64x128xf32> -> vector<64x128xf32>
    %5 = vector.extract_strided_slice %2 {offsets = [32, 0], sizes = [8, 128], strides = [1, 1]} : vector<40x128xf32> to vector<8x128xf32>
    %6 = tpu.reciprocal %5 {approx = true} : vector<8x128xf32> -> vector<8x128xf32>
    %7 = arith.mulf %5, %6 : vector<8x128xf32>
    %cst_5 = arith.constant 2.000000e+00 : f32
    %8 = vector.broadcast %cst_5 : f32 to vector<8x128xf32>
    %9 = arith.subf %8, %7 : vector<8x128xf32>
    %10 = arith.mulf %6, %9 : vector<8x128xf32>
    %11 = vector.extract_strided_slice %2 {offsets = [0, 0], sizes = [8, 128], strides = [1, 1]} : vector<40x128xf32> to vector<8x128xf32>
    %12 = arith.mulf %11, %10 : vector<8x128xf32>
    %13 = vector.extract_strided_slice %2 {offsets = [8, 0], sizes = [8, 128], strides = [1, 1]} : vector<40x128xf32> to vector<8x128xf32>
    %14 = arith.mulf %13, %10 : vector<8x128xf32>
    %15 = vector.extract_strided_slice %2 {offsets = [16, 0], sizes = [8, 128], strides = [1, 1]} : vector<40x128xf32> to vector<8x128xf32>
    %16 = arith.mulf %15, %10 : vector<8x128xf32>
    %c0_6 = arith.constant 0 : index
    %c0_7 = arith.constant 0 : index
    %17 = vector.load %arg2[%c0_6, %c0_7] : memref<9x128xf32, #tpu.memory_space<vmem>>, vector<9x128xf32>
    %18 = vector.extract_strided_slice %17 {offsets = [0, 0], sizes = [1, 128], strides = [1, 1]} : vector<9x128xf32> to vector<1x128xf32>
    %19 = vector.extract_strided_slice %17 {offsets = [1, 0], sizes = [1, 128], strides = [1, 1]} : vector<9x128xf32> to vector<1x128xf32>
    %20 = vector.extract_strided_slice %17 {offsets = [2, 0], sizes = [1, 128], strides = [1, 1]} : vector<9x128xf32> to vector<1x128xf32>
    %21 = vector.extract_strided_slice %17 {offsets = [3, 0], sizes = [1, 128], strides = [1, 1]} : vector<9x128xf32> to vector<1x128xf32>
    %22 = vector.extract_strided_slice %17 {offsets = [4, 0], sizes = [1, 128], strides = [1, 1]} : vector<9x128xf32> to vector<1x128xf32>
    %23 = vector.extract_strided_slice %17 {offsets = [5, 0], sizes = [1, 128], strides = [1, 1]} : vector<9x128xf32> to vector<1x128xf32>
    %24 = vector.extract_strided_slice %17 {offsets = [6, 0], sizes = [1, 128], strides = [1, 1]} : vector<9x128xf32> to vector<1x128xf32>
    %25 = vector.extract_strided_slice %17 {offsets = [7, 0], sizes = [1, 128], strides = [1, 1]} : vector<9x128xf32> to vector<1x128xf32>
    %26 = vector.extract_strided_slice %17 {offsets = [8, 0], sizes = [1, 128], strides = [1, 1]} : vector<9x128xf32> to vector<1x128xf32>
    %27 = arith.subf %24, %21 : vector<1x128xf32>
    %28 = arith.subf %25, %22 : vector<1x128xf32>
    %29 = arith.subf %26, %23 : vector<1x128xf32>
    %30 = arith.subf %18, %21 : vector<1x128xf32>
    %31 = arith.subf %19, %22 : vector<1x128xf32>
    %32 = arith.subf %20, %23 : vector<1x128xf32>
    %33 = arith.mulf %27, %27 : vector<1x128xf32>
    %34 = arith.mulf %28, %28 : vector<1x128xf32>
    %35 = arith.addf %33, %34 : vector<1x128xf32>
    %36 = arith.mulf %29, %29 : vector<1x128xf32>
    %37 = arith.addf %35, %36 : vector<1x128xf32>
    %38 = math.sqrt %37 : vector<1x128xf32>
    %cst_8 = arith.constant 9.99999993E-9 : f32
    %39 = vector.broadcast %cst_8 : f32 to vector<1x128xf32>
    %40 = arith.addf %38, %39 : vector<1x128xf32>
    %41 = tpu.reciprocal %40 {approx = true} : vector<1x128xf32> -> vector<1x128xf32>
    %42 = arith.mulf %40, %41 : vector<1x128xf32>
    %cst_9 = arith.constant 2.000000e+00 : f32
    %43 = vector.broadcast %cst_9 : f32 to vector<1x128xf32>
    %44 = arith.subf %43, %42 : vector<1x128xf32>
    %45 = arith.mulf %41, %44 : vector<1x128xf32>
    %46 = arith.mulf %27, %45 : vector<1x128xf32>
    %47 = arith.mulf %28, %45 : vector<1x128xf32>
    %48 = arith.mulf %29, %45 : vector<1x128xf32>
    %49 = arith.mulf %46, %30 : vector<1x128xf32>
    %50 = arith.mulf %47, %31 : vector<1x128xf32>
    %51 = arith.addf %49, %50 : vector<1x128xf32>
    %52 = arith.mulf %48, %32 : vector<1x128xf32>
    %53 = arith.addf %51, %52 : vector<1x128xf32>
    %54 = arith.mulf %53, %46 : vector<1x128xf32>
    %55 = arith.subf %30, %54 : vector<1x128xf32>
    %56 = arith.mulf %53, %47 : vector<1x128xf32>
    %57 = arith.subf %31, %56 : vector<1x128xf32>
    %58 = arith.mulf %53, %48 : vector<1x128xf32>
    %59 = arith.subf %32, %58 : vector<1x128xf32>
    %60 = arith.mulf %55, %55 : vector<1x128xf32>
    %61 = arith.mulf %57, %57 : vector<1x128xf32>
    %62 = arith.addf %60, %61 : vector<1x128xf32>
    %63 = arith.mulf %59, %59 : vector<1x128xf32>
    %64 = arith.addf %62, %63 : vector<1x128xf32>
    %65 = math.sqrt %64 : vector<1x128xf32>
    %cst_10 = arith.constant 9.99999993E-9 : f32
    %66 = vector.broadcast %cst_10 : f32 to vector<1x128xf32>
    %67 = arith.addf %65, %66 : vector<1x128xf32>
    %68 = tpu.reciprocal %67 {approx = true} : vector<1x128xf32> -> vector<1x128xf32>
    %69 = arith.mulf %67, %68 : vector<1x128xf32>
    %cst_11 = arith.constant 2.000000e+00 : f32
    %70 = vector.broadcast %cst_11 : f32 to vector<1x128xf32>
    %71 = arith.subf %70, %69 : vector<1x128xf32>
    %72 = arith.mulf %68, %71 : vector<1x128xf32>
    %73 = arith.mulf %55, %72 : vector<1x128xf32>
    %74 = arith.mulf %57, %72 : vector<1x128xf32>
    %75 = arith.mulf %59, %72 : vector<1x128xf32>
    %76 = arith.mulf %47, %75 : vector<1x128xf32>
    %77 = arith.mulf %48, %74 : vector<1x128xf32>
    %78 = arith.subf %76, %77 : vector<1x128xf32>
    %79 = arith.mulf %48, %73 : vector<1x128xf32>
    %80 = arith.mulf %46, %75 : vector<1x128xf32>
    %81 = arith.subf %79, %80 : vector<1x128xf32>
    %82 = arith.mulf %46, %74 : vector<1x128xf32>
    %83 = arith.mulf %47, %73 : vector<1x128xf32>
    %84 = arith.subf %82, %83 : vector<1x128xf32>
    %85 = vector.broadcast %46 : vector<1x128xf32> to vector<8x128xf32>
    %86 = arith.mulf %12, %85 : vector<8x128xf32>
    %87 = vector.broadcast %73 : vector<1x128xf32> to vector<8x128xf32>
    %88 = arith.mulf %14, %87 : vector<8x128xf32>
    %89 = arith.addf %86, %88 : vector<8x128xf32>
    %90 = vector.broadcast %78 : vector<1x128xf32> to vector<8x128xf32>
    %91 = arith.mulf %16, %90 : vector<8x128xf32>
    %92 = arith.addf %89, %91 : vector<8x128xf32>
    %93 = vector.broadcast %21 : vector<1x128xf32> to vector<8x128xf32>
    %94 = arith.addf %92, %93 : vector<8x128xf32>
    %c0_12 = arith.constant 0 : index
    %c0_13 = arith.constant 0 : index
    %95 = vector.load %arg5[%c0_12, %c0_13] : memref<104x128xf32, #tpu.memory_space<vmem>>, vector<8x128xf32>
    tpu.vector_store %arg5[%c0_12, %c0_13], %94 {strides = array<i32>} : memref<104x128xf32, #tpu.memory_space<vmem>>, vector<8x128xf32>,
    %96 = vector.broadcast %47 : vector<1x128xf32> to vector<8x128xf32>
    %97 = arith.mulf %12, %96 : vector<8x128xf32>
    %98 = vector.broadcast %74 : vector<1x128xf32> to vector<8x128xf32>
    %99 = arith.mulf %14, %98 : vector<8x128xf32>
    %100 = arith.addf %97, %99 : vector<8x128xf32>
    %101 = vector.broadcast %81 : vector<1x128xf32> to vector<8x128xf32>
    %102 = arith.mulf %16, %101 : vector<8x128xf32>
    %103 = arith.addf %100, %102 : vector<8x128xf32>
    %104 = vector.broadcast %22 : vector<1x128xf32> to vector<8x128xf32>
    %105 = arith.addf %103, %104 : vector<8x128xf32>
    %c8 = arith.constant 8 : index
    %c0_14 = arith.constant 0 : index
    %106 = vector.load %arg5[%c8, %c0_14] : memref<104x128xf32, #tpu.memory_space<vmem>>, vector<8x128xf32>
    tpu.vector_store %arg5[%c8, %c0_14], %105 {strides = array<i32>} : memref<104x128xf32, #tpu.memory_space<vmem>>, vector<8x128xf32>,
    %107 = vector.broadcast %48 : vector<1x128xf32> to vector<8x128xf32>
    %108 = arith.mulf %12, %107 : vector<8x128xf32>
    %109 = vector.broadcast %75 : vector<1x128xf32> to vector<8x128xf32>
    %110 = arith.mulf %14, %109 : vector<8x128xf32>
    %111 = arith.addf %108, %110 : vector<8x128xf32>
    %112 = vector.broadcast %84 : vector<1x128xf32> to vector<8x128xf32>
    %113 = arith.mulf %16, %112 : vector<8x128xf32>
    %114 = arith.addf %111, %113 : vector<8x128xf32>
    %115 = vector.broadcast %23 : vector<1x128xf32> to vector<8x128xf32>
    %116 = arith.addf %114, %115 : vector<8x128xf32>
    %c16 = arith.constant 16 : index
    %c0_15 = arith.constant 0 : index
    %117 = vector.load %arg5[%c16, %c0_15] : memref<104x128xf32, #tpu.memory_space<vmem>>, vector<8x128xf32>
    tpu.vector_store %arg5[%c16, %c0_15], %116 {strides = array<i32>} : memref<104x128xf32, #tpu.memory_space<vmem>>, vector<8x128xf32>,
    %118 = vector.extract_strided_slice %2 {offsets = [24, 0], sizes = [8, 128], strides = [1, 1]} : vector<40x128xf32> to vector<8x128xf32>
    %119 = arith.mulf %118, %10 : vector<8x128xf32>
    %c24 = arith.constant 24 : index
    %c0_16 = arith.constant 0 : index
    %120 = vector.load %arg5[%c24, %c0_16] : memref<104x128xf32, #tpu.memory_space<vmem>>, vector<8x128xf32>
    tpu.vector_store %arg5[%c24, %c0_16], %119 {strides = array<i32>} : memref<104x128xf32, #tpu.memory_space<vmem>>, vector<8x128xf32>,
    %c32 = arith.constant 32 : index
    %c0_17 = arith.constant 0 : index
    %121 = vector.load %arg5[%c32, %c0_17] : memref<104x128xf32, #tpu.memory_space<vmem>>, vector<8x128xf32>
    tpu.vector_store %arg5[%c32, %c0_17], %5 {strides = array<i32>} : memref<104x128xf32, #tpu.memory_space<vmem>>, vector<8x128xf32>,
    %c0_18 = arith.constant 0 : index
    %c0_19 = arith.constant 0 : index
    %122 = vector.load %arg4[%c0_18, %c0_19] : memref<64x8xf32, #tpu.memory_space<vmem>>, vector<64x8xf32>
    %cst_20 = arith.constant dense<0.000000e+00> : vector<64x128xf32>
    %123 = tpu.matmul %122, %10, %cst_20 {dimension_numbers = #tpu.dot_dimension_numbers<[1], [0], [0], [1], [0, 0, 1, 1], [], []>} : vector<64x8xf32>, vector<8x128xf32>, vector<64x128xf32> -> vector<64x128xf32>
    %124 = arith.mulf %4, %123 : vector<64x128xf32>
    %c40_21 = arith.constant 40 : index
    %c0_22 = arith.constant 0 : index
    %125 = vector.load %arg5[%c40_21, %c0_22] : memref<104x128xf32, #tpu.memory_space<vmem>>, vector<64x128xf32>
    tpu.vector_store %arg5[%c40_21, %c0_22], %124 {strides = array<i32>} : memref<104x128xf32, #tpu.memory_space<vmem>>, vector<64x128xf32>,
    return
  }
  func.func @transform_0(%arg0: i32) -> (i32, i32) {
    %c0_i32 = arith.constant 0 : i32
    %c0_i32_0 = arith.constant 0 : i32
    return %c0_i32, %arg0 : i32, i32
  }
  func.func @transform_1(%arg0: i32) -> (i32, i32) {
    %c0_i32 = arith.constant 0 : i32
    %c0_i32_0 = arith.constant 0 : i32
    return %c0_i32, %arg0 : i32, i32
  }
  func.func @transform_2(%arg0: i32) -> (i32, i32) {
    %c0_i32 = arith.constant 0 : i32
    %c0_i32_0 = arith.constant 0 : i32
    %c0_i32_1 = arith.constant 0 : i32
    return %c0_i32, %c0_i32_0 : i32, i32
  }
  func.func @transform_3(%arg0: i32) -> (i32, i32) {
    %c0_i32 = arith.constant 0 : i32
    %c0_i32_0 = arith.constant 0 : i32
    %c0_i32_1 = arith.constant 0 : i32
    return %c0_i32, %c0_i32_0 : i32, i32
  }
  func.func @transform_4(%arg0: i32) -> (i32, i32) {
    %c0_i32 = arith.constant 0 : i32
    %c0_i32_0 = arith.constant 0 : i32
    return %c0_i32, %arg0 : i32, i32
  }
}

</mosaic_0001>

<llo_original>
// kernel: _bb2martini_core.1
$region0: #{_bb2martini_core.1}
  #allocation0 [shape = 'u32[]', space=smem, size = 0x4, offset = 0x4, fixed_abs, tag = 'smem constant byte address 0x4 - core index']
  #allocation1 [shape = 'u32[72,128]{1,0:T(1,128)}', space=vmem, size = 0x9000, scoped, tag = 'internal scratch']
  %s0 = inlined_call_operand.vmem [shape: f32[20,256], index: 0, kind: input, shape index: {}]
  %s1 = inlined_call_operand.vmem [shape: f32[9,256], index: 1, kind: input, shape index: {}]
  %s2 = inlined_call_operand.vmem [shape: f32[104,20], index: 2, kind: input, shape index: {}]
  %s3 = inlined_call_operand.vmem [shape: f32[64,8], index: 3, kind: input, shape index: {}]
  %s4 = inlined_call_operand.vmem [shape: f32[104,256], index: 4, kind: output, shape index: {}]
  %s5 = sld [smem:[#allocation0]]
  $region159: #{_bb2martini_core.1} parent=0
    _
  %s7 = ssub.s32 1, %s5
  %s8 = scalar_select 0, %s7, %s5
  $region1: #{_bb2martini_core.1} parent=0
    #allocation2 [shape = 'u8[24576]{0}', space=vmem, size = 0x6000, scoped, tag = 'input window, operand 0']
    #allocation3 [shape = 'u8[16384]{0}', space=vmem, size = 0x4000, scoped, tag = 'input window, operand 1']
    #allocation4 [shape = 'u8[106496]{0}', space=vmem, size = 0x1a000, scoped, tag = 'output window, operand 0']
    loop: start=0, step=1, limit=4
    $region2: #{_bb2martini_core.1} parent=1 // loop_pre_header
      _
    $region3: #{_bb2martini_core.1} parent=1 // loop_header
      %s10 = sphi 0, %s14
      %p11 = scmp.ge.s32.totalorder %s10, 4
      %s20 = sphi 0, %s22
      %s23 = sphi 0, %s20
      %s24 = sphi 0, %s23
      %s40 = sphi 0, %s24
      %s46 = sphi 0, %s48
      %s49 = sphi 0, %s46
      %s50 = sphi 0, %s49
      %s66 = sphi 0, %s50
      %s70 = sphi 0, %s70
      %s72 = sphi 0, %s70
      %s73 = sphi 0, %s72
      %s87 = sphi 0, %s73
      %s91 = sphi 0, %s91
      %s93 = sphi 0, %s91
      %s94 = sphi 0, %s93
      %s108 = sphi 0, %s94
      %s114 = sphi 0, %s116
      %s117 = sphi 0, %s114
      %s118 = sphi 0, %s117
      %s134 = sphi 0, %s118
    $region4: #{_bb2martini_core.1} parent=1 // loop_header_branch
      %13 = sbr.rel (%p11) target = $region8
    $region5: #{_bb2martini_core.1} parent=1 // loop_body
      %s15 = ssub.s32 %s10, 1
      %s16 = ssub.s32 %s10, 2
      %s17 = sadd.s32 %s10, 1
      %s18 = ssub.s32 %s10, %s17
      %p19 = scmp.eq.s32.totalorder %s18, 0
      %s21 = sadd.s32 %s20, 1
      %s22 = scalar_select %p19, %s20, %s21
      %p25 = pneg %p19
      %p26 = scmp.eq.s32.totalorder %s10, 1
      %p27 = por %p25, %p26
      %p28 = scmp.ne.s32.totalorder %s20, %s23
      %p29 = scmp.eq.s32.totalorder %s10, 0
      %p30 = por %p28, %p29
      %p31 = scmp.ne.s32.totalorder %s20, %s23
      %p32 = scmp.eq.s32.totalorder %s15, 1
      %p33 = por %p31, %p32
      %p34 = scmp.ne.s32.totalorder %s23, %s24
      %p35 = scmp.eq.s32.totalorder %s15, 0
      %p36 = por %p34, %p35
      %p37 = scmp.ne.s32.totalorder %s23, %s24
      %p38 = scmp.eq.s32.totalorder %s16, 1
      %p39 = por %p37, %p38
      %p41 = scmp.ne.s32.totalorder %s24, %s40
      %p42 = scmp.eq.s32.totalorder %s16, 0
      %p43 = por %p41, %p42
      %s44 = ssub.s32 %s10, %s17
      %p45 = scmp.eq.s32.totalorder %s44, 0
      %s47 = sadd.s32 %s46, 1
      %s48 = scalar_select %p45, %s46, %s47
      %p51 = pneg %p45
      %p52 = scmp.eq.s32.totalorder %s10, 1
      %p53 = por %p51, %p52
      %p54 = scmp.ne.s32.totalorder %s46, %s49
      %p55 = scmp.eq.s32.totalorder %s10, 0
      %p56 = por %p54, %p55
      %p57 = scmp.ne.s32.totalorder %s46, %s49
      %p58 = scmp.eq.s32.totalorder %s15, 1
      %p59 = por %p57, %p58
      %p60 = scmp.ne.s32.totalorder %s49, %s50
      %p61 = scmp.eq.s32.totalorder %s15, 0
      %p62 = por %p60, %p61
      %p63 = scmp.ne.s32.totalorder %s49, %s50
      %p64 = scmp.eq.s32.totalorder %s16, 1
      %p65 = por %p63, %p64
      %p67 = scmp.ne.s32.totalorder %s50, %s66
      %p68 = scmp.eq.s32.totalorder %s16, 0
      %p69 = por %p67, %p68
      %s71 = sadd.s32 %s70, 1
      %p74 = scmp.eq.s32.totalorder %s10, 1
      %p75 = scmp.ne.s32.totalorder %s70, %s72
      %p76 = scmp.eq.s32.totalorder %s10, 0
      %p77 = por %p75, %p76
      %p78 = scmp.ne.s32.totalorder %s70, %s72
      %p79 = scmp.eq.s32.totalorder %s15, 1
      %p80 = por %p78, %p79
      %p81 = scmp.ne.s32.totalorder %s72, %s73
      %p82 = scmp.eq.s32.totalorder %s15, 0
      %p83 = por %p81, %p82
      %p84 = scmp.ne.s32.totalorder %s72, %s73
      %p85 = scmp.eq.s32.totalorder %s16, 1
      %p86 = por %p84, %p85
      %p88 = scmp.ne.s32.totalorder %s73, %s87
      %p89 = scmp.eq.s32.totalorder %s16, 0
      %p90 = por %p88, %p89
      %s92 = sadd.s32 %s91, 1
      %p95 = scmp.eq.s32.totalorder %s10, 1
      %p96 = scmp.ne.s32.totalorder %s91, %s93
      %p97 = scmp.eq.s32.totalorder %s10, 0
      %p98 = por %p96, %p97
      %p99 = scmp.ne.s32.totalorder %s91, %s93
      %p100 = scmp.eq.s32.totalorder %s15, 1
      %p101 = por %p99, %p100
      %p102 = scmp.ne.s32.totalorder %s93, %s94
      %p103 = scmp.eq.s32.totalorder %s15, 0
      %p104 = por %p102, %p103
      %p105 = scmp.ne.s32.totalorder %s93, %s94
      %p106 = scmp.eq.s32.totalorder %s16, 1
      %p107 = por %p105, %p106
      %p109 = scmp.ne.s32.totalorder %s94, %s108
      %p110 = scmp.eq.s32.totalorder %s16, 0
      %p111 = por %p109, %p110
      %s112 = ssub.s32 %s10, %s17
      %p113 = scmp.eq.s32.totalorder %s112, 0
      %s115 = sadd.s32 %s114, 1
      %s116 = scalar_select %p113, %s114, %s115
      %p119 = pneg %p113
      %p120 = scmp.eq.s32.totalorder %s10, 1
      %p121 = por %p119, %p120
      %p122 = scmp.ne.s32.totalorder %s114, %s117
      %p123 = scmp.eq.s32.totalorder %s10, 0
      %p124 = por %p122, %p123
      %p125 = scmp.ne.s32.totalorder %s114, %s117
      %p126 = scmp.eq.s32.totalorder %s15, 1
      %p127 = por %p125, %p126
      %p128 = scmp.ne.s32.totalorder %s117, %s118
      %p129 = scmp.eq.s32.totalorder %s15, 0
      %p130 = por %p128, %p129
      %p131 = scmp.ne.s32.totalorder %s117, %s118
      %p132 = scmp.eq.s32.totalorder %s16, 1
      %p133 = por %p131, %p132
      %p135 = scmp.ne.s32.totalorder %s118, %s134
      %p136 = scmp.eq.s32.totalorder %s16, 0
      %p137 = por %p135, %p136
      %p138 = scmp.le.s32.totalorder 1, %s10
      %p139 = scmp.lt.s32.totalorder %s10, 3
      %p140 = pnand %p138, %p139
      %p141 = pneg %p140
      // Predicated region
      $region9: #{_bb2martini_core.1} parent=5 // pred_check
        _
      $region10: #{_bb2martini_core.1} parent=5 // pred_check_branch
        %143 = sbr.rel (%p140) target = $region12
      $region11: #{_bb2martini_core.1} parent=5 // pred_region
        %s144 = ssub.s32 %s10, 1
        // Predicated region
        $region13: #{_bb2martini_core.1} parent=11 // pred_check
          %p145 = pneg %p83
        $region14: #{_bb2martini_core.1} parent=11 // pred_check_branch
          %147 = sbr.rel (%p145) target = $region16
        $region15: #{_bb2martini_core.1} parent=11 // pred_region
          _
        $region16: #{_bb2martini_core.1} parent=11 // pred_fallthru
          _
        // Predicated region
        $region17: #{_bb2martini_core.1} parent=11 // pred_check
          %p148 = pneg %p104
        $region18: #{_bb2martini_core.1} parent=11 // pred_check_branch
          %150 = sbr.rel (%p148) target = $region20
        $region19: #{_bb2martini_core.1} parent=11 // pred_region
          _
        $region20: #{_bb2martini_core.1} parent=11 // pred_fallthru
          _
      $region12: #{_bb2martini_core.1} parent=5 // pred_fallthru
        _
      %p151 = scmp.lt.s32.totalorder %s10, 2
      // Predicated region
      $region21: #{_bb2martini_core.1} parent=5 // pred_check
        %p152 = pneg %p151
      $region22: #{_bb2martini_core.1} parent=5 // pred_check_branch
        %154 = sbr.rel (%p152) target = $region24
      $region23: #{_bb2martini_core.1} parent=5 // pred_region
        // Predicated region
        $region25: #{_bb2martini_core.1} parent=23 // pred_check
          %p155 = pneg %p30
        $region26: #{_bb2martini_core.1} parent=23 // pred_check_branch
          %157 = sbr.rel (%p155) target = $region28
        $region27: #{_bb2martini_core.1} parent=23 // pred_region
          %s158 = sand.u32 %s20, 1
          %s159 = sand.u32 %s20, 1
          %s160 = smul.addr %s159, 24
          %s161 = scalar_lea.vmem [#allocation2], %s160
          %s162 = smul.addr %s10, 8
          %s163 = scalar_lea.vmem %s0, %s162
          // Predicated region
          $region29: #{_bb2martini_core.1} parent=27 // pred_check
            _
          $region30: #{_bb2martini_core.1} parent=27 // pred_check_branch
            %165 = sbr.rel (0) target = $region32
          $region31: #{_bb2martini_core.1} parent=27 // pred_region
            // Predicated region
            $region33: #{_bb2martini_core.1} parent=31 // pred_check
              _
            $region34: #{_bb2martini_core.1} parent=31 // pred_check_branch
              %167 = sbr.rel (0) target = $region36
            $region35: #{_bb2martini_core.1} parent=31 // pred_region
              // Predicated region
              $region48: #{_bb2martini_core.1} parent=35 // pred_check
                _
              $region49: #{_bb2martini_core.1} parent=35 // pred_check_branch
                %187 = sbr.rel (0) target = $region51
              $region50: #{_bb2martini_core.1} parent=35 // pred_region
                loop: start=0, step=1, limit=1
                $region52: #{_bb2martini_core.1} parent=50 // loop_pre_header
                  _
                $region53: #{_bb2martini_core.1} parent=50 // loop_header
                  %s189 = sphi 0, %s193
                  %p190 = scmp.ge.s32.totalorder %s189, 1
                  %s194 = sphi %s163, %s163
                  %s195 = sphi %s161, %s161
                $region54: #{_bb2martini_core.1} parent=50 // loop_header_branch
                  %192 = sbr.rel (%p190) target = $region58
                $region55: #{_bb2martini_core.1} parent=50 // loop_body
                  %v196 = vld [vmem:[%s194] sm:$0xff]
                  %197 = vst [vmem:[%s195] sm:$0xff] %v196
                  %v198 = vld [vmem:[%s194 + $0x10] sm:$0xff]
                  %199 = vst [vmem:[%s195 + $0x8] sm:$0xff] %v198
                  %v200 = vld [vmem:[%s194 + $0x20] sm:$0xff]
                  %201 = vst [vmem:[%s195 + $0x10] sm:$0xff] %v200
                $region56: #{_bb2martini_core.1} parent=50 // loop_footer
                  %s193 = sadd.s32 1, %s189
                $region57: #{_bb2martini_core.1} parent=50 // loop_footer_branch
                  %188 = sbr.rel target = $region53
                $region58: #{_bb2martini_core.1} parent=50 // loop_exit
                  _
              $region51: #{_bb2martini_core.1} parent=35 // pred_fallthru
                _
              // Predicated region
              $region59: #{_bb2martini_core.1} parent=35 // pred_check
                _
              $region60: #{_bb2martini_core.1} parent=35 // pred_check_branch
                %203 = sbr.rel target = $region62
              $region61: #{_bb2martini_core.1} parent=35 // pred_region
                _
              $region62: #{_bb2martini_core.1} parent=35 // pred_fallthru
                _
            $region36: #{_bb2martini_core.1} parent=31 // pred_fallthru
              _
            // Predicated region
            $region37: #{_bb2martini_core.1} parent=31 // pred_check
              _
            $region38: #{_bb2martini_core.1} parent=31 // pred_check_branch
              %169 = sbr.rel target = $region40
            $region39: #{_bb2martini_core.1} parent=31 // pred_region
              %s171 = ssub.s32 256, 1
              loop: start=0, step=1, limit=1
              $region41: #{_bb2martini_core.1} parent=39 // loop_pre_header
                _
              $region42: #{_bb2martini_core.1} parent=39 // loop_header
                %s173 = sphi 0, %s177
                %p174 = scmp.ge.s32.totalorder %s173, 1
                %s178 = sphi %s163, %s163
                %s179 = sphi %s161, %s161
              $region43: #{_bb2martini_core.1} parent=39 // loop_header_branch
                %176 = sbr.rel (%p174) target = $region47
              $region44: #{_bb2martini_core.1} parent=39 // loop_body
                %v180 = vld [vmem:[%s178] sm:%s171]
                %181 = vst [vmem:[%s179] sm:%s171] %v180
                %v182 = vld [vmem:[%s178 + $0x10] sm:%s171]
                %183 = vst [vmem:[%s179 + $0x8] sm:%s171] %v182
                %v184 = vld [vmem:[%s178 + $0x20] sm:%s171]
                %185 = vst [vmem:[%s179 + $0x10] sm:%s171] %v184
              $region45: #{_bb2martini_core.1} parent=39 // loop_footer
                %s177 = sadd.s32 1, %s173
              $region46: #{_bb2martini_core.1} parent=39 // loop_footer_branch
                %172 = sbr.rel target = $region42
              $region47: #{_bb2martini_core.1} parent=39 // loop_exit
                _
            $region40: #{_bb2martini_core.1} parent=31 // pred_fallthru
              _
          $region32: #{_bb2martini_core.1} parent=27 // pred_fallthru
            _
          %204 = vnop
        $region28: #{_bb2martini_core.1} parent=23 // pred_fallthru
          _
        // Predicated region
        $region63: #{_bb2martini_core.1} parent=23 // pred_check
          %p205 = pneg %p56
        $region64: #{_bb2martini_core.1} parent=23 // pred_check_branch
          %207 = sbr.rel (%p205) target = $region66
        $region65: #{_bb2martini_core.1} parent=23 // pred_region
          %s208 = sand.u32 %s46, 1
          %s209 = sand.u32 %s46, 1
          %s210 = smul.addr %s209, 16
          %s211 = scalar_lea.vmem [#allocation3], %s210
          %s212 = smul.addr %s10, 8
          %s213 = scalar_lea.vmem %s1, %s212
          // Predicated region
          $region67: #{_bb2martini_core.1} parent=65 // pred_check
            _
          $region68: #{_bb2martini_core.1} parent=65 // pred_check_branch
            %215 = sbr.rel (0) target = $region70
          $region69: #{_bb2martini_core.1} parent=65 // pred_region
            // Predicated region
            $region71: #{_bb2martini_core.1} parent=69 // pred_check
              _
            $region72: #{_bb2martini_core.1} parent=69 // pred_check_branch
              %217 = sbr.rel (0) target = $region74
            $region73: #{_bb2martini_core.1} parent=69 // pred_region
              // Predicated region
              $region86: #{_bb2martini_core.1} parent=73 // pred_check
                _
              $region87: #{_bb2martini_core.1} parent=73 // pred_check_branch
                %235 = sbr.rel (0) target = $region89
              $region88: #{_bb2martini_core.1} parent=73 // pred_region
                loop: start=0, step=1, limit=1
                $region90: #{_bb2martini_core.1} parent=88 // loop_pre_header
                  _
                $region91: #{_bb2martini_core.1} parent=88 // loop_header
                  %s237 = sphi 0, %s241
                  %p238 = scmp.ge.s32.totalorder %s237, 1
                  %s242 = sphi %s213, %s213
                  %s243 = sphi %s211, %s211
                $region92: #{_bb2martini_core.1} parent=88 // loop_header_branch
                  %240 = sbr.rel (%p238) target = $region96
                $region93: #{_bb2martini_core.1} parent=88 // loop_body
                  %v244 = vld [vmem:[%s242] sm:$0xff]
                  %245 = vst [vmem:[%s243] sm:$0xff] %v244
                  %v246 = vld [vmem:[%s242 + $0x10] sm:$0xff]
                  %247 = vst [vmem:[%s243 + $0x8] sm:$0xff] %v246
                $region94: #{_bb2martini_core.1} parent=88 // loop_footer
                  %s241 = sadd.s32 1, %s237
                $region95: #{_bb2martini_core.1} parent=88 // loop_footer_branch
                  %236 = sbr.rel target = $region91
                $region96: #{_bb2martini_core.1} parent=88 // loop_exit
                  _
              $region89: #{_bb2martini_core.1} parent=73 // pred_fallthru
                _
              // Predicated region
              $region97: #{_bb2martini_core.1} parent=73 // pred_check
                _
              $region98: #{_bb2martini_core.1} parent=73 // pred_check_branch
                %249 = sbr.rel target = $region100
              $region99: #{_bb2martini_core.1} parent=73 // pred_region
                _
              $region100: #{_bb2martini_core.1} parent=73 // pred_fallthru
                _
            $region74: #{_bb2martini_core.1} parent=69 // pred_fallthru
              _
            // Predicated region
            $region75: #{_bb2martini_core.1} parent=69 // pred_check
              _
            $region76: #{_bb2martini_core.1} parent=69 // pred_check_branch
              %219 = sbr.rel target = $region78
            $region77: #{_bb2martini_core.1} parent=69 // pred_region
              %s221 = ssub.s32 256, 1
              loop: start=0, step=1, limit=1
              $region79: #{_bb2martini_core.1} parent=77 // loop_pre_header
                _
              $region80: #{_bb2martini_core.1} parent=77 // loop_header
                %s223 = sphi 0, %s227
                %p224 = scmp.ge.s32.totalorder %s223, 1
                %s228 = sphi %s213, %s213
                %s229 = sphi %s211, %s211
              $region81: #{_bb2martini_core.1} parent=77 // loop_header_branch
                %226 = sbr.rel (%p224) target = $region85
              $region82: #{_bb2martini_core.1} parent=77 // loop_body
                %v230 = vld [vmem:[%s228] sm:%s221]
                %231 = vst [vmem:[%s229] sm:%s221] %v230
                %v232 = vld [vmem:[%s228 + $0x10] sm:%s221]
                %233 = vst [vmem:[%s229 + $0x8] sm:%s221] %v232
              $region83: #{_bb2martini_core.1} parent=77 // loop_footer
                %s227 = sadd.s32 1, %s223
              $region84: #{_bb2martini_core.1} parent=77 // loop_footer_branch
                %222 = sbr.rel target = $region80
              $region85: #{_bb2martini_core.1} parent=77 // loop_exit
                _
            $region78: #{_bb2martini_core.1} parent=69 // pred_fallthru
              _
          $region70: #{_bb2martini_core.1} parent=65 // pred_fallthru
            _
          %250 = vnop
        $region66: #{_bb2martini_core.1} parent=23 // pred_fallthru
          _
      $region24: #{_bb2martini_core.1} parent=5 // pred_fallthru
        _
      %p251 = scmp.le.s32.totalorder 1, %s10
      %p252 = scmp.lt.s32.totalorder %s10, 3
      %p253 = pnand %p251, %p252
      %p254 = pneg %p253
      // Predicated region
      $region101: #{_bb2martini_core.1} parent=5 // pred_check
        _
      $region102: #{_bb2martini_core.1} parent=5 // pred_check_branch
        %256 = sbr.rel (%p253) target = $region104
      $region103: #{_bb2martini_core.1} parent=5 // pred_region
        %s257 = ssub.s32 %s10, 1
        %s258 = sand.u32 %s23, 1
        %s259 = sand.u32 %s23, 1
        %s260 = smul.addr %s259, 24
        %s261 = scalar_lea.vmem [#allocation2], %s260
        // Predicated region
        $region105: #{_bb2martini_core.1} parent=103 // pred_check
          %p262 = pneg %p36
        $region106: #{_bb2martini_core.1} parent=103 // pred_check_branch
          %264 = sbr.rel (%p262) target = $region108
        $region107: #{_bb2martini_core.1} parent=103 // pred_region
          _
        $region108: #{_bb2martini_core.1} parent=103 // pred_fallthru
          _
        %s265 = sand.u32 %s49, 1
        %s266 = sand.u32 %s49, 1
        %s267 = smul.addr %s266, 16
        %s268 = scalar_lea.vmem [#allocation3], %s267
        // Predicated region
        $region109: #{_bb2martini_core.1} parent=103 // pred_check
          %p269 = pneg %p62
        $region110: #{_bb2martini_core.1} parent=103 // pred_check_branch
          %271 = sbr.rel (%p269) target = $region112
        $region111: #{_bb2martini_core.1} parent=103 // pred_region
          _
        $region112: #{_bb2martini_core.1} parent=103 // pred_fallthru
          _
        %s272 = sand.u32 %s23, 1
        %s273 = sand.u32 %s23, 1
        %s274 = smul.addr %s273, 24
        %s275 = scalar_lea.vmem [#allocation2], %s274
        %p276 = pneg %p36
        %p277 = pneg %p33
        %s278 = sand.u32 %s49, 1
        %s279 = sand.u32 %s49, 1
        %s280 = smul.addr %s279, 16
        %s281 = scalar_lea.vmem [#allocation3], %s280
        %p282 = pneg %p62
        %p283 = pneg %p59
        %p284 = pneg %p83
        %p285 = pneg %p80
        %p286 = pneg %p104
        %p287 = pneg %p101
        %p288 = pneg %p130
        %p289 = pneg %p127
        %s290 = sand.u32 %s117, 1
        %s291 = sand.u32 %s117, 1
        %s292 = smul.addr %s291, 104
        %s293 = scalar_lea.vmem [#allocation4], %s292
        %v294 = vld [vmem:[%s261] sm:$0xff]
        %v295 = vld [vmem:[%s261 + $0x8] sm:$0xff]
        %v296 = vld [vmem:[%s261 + $0x10] sm:$0xf]
        %v297 = vld [vmem:[%s2] sm:$0xff]
        %v298 = vld [vmem:[%s2 + $0x8] sm:$0xff]
        %v299 = vld [vmem:[%s2 + $0x10] sm:$0xff]
        %v300 = vld [vmem:[%s2 + $0x18] sm:$0xff]
        %v301 = vld [vmem:[%s2 + $0x20] sm:$0xff]
        %vm302 = vcmask 162816
        %v304 = vsel %vm302, %v297, 0
        %v307 = vsel %vm302, %v298, 0
        %v310 = vsel %vm302, %v299, 0
        %v313 = vsel %vm302, %v300, 0
        %v316 = vsel %vm302, %v301, 0
        %vm318 = vcmask 1043456
        %v320 = vsel %vm318, %v296, 0
        %322 = vmatpush.msra.mxu0 0.0
        %323 = vmatpush.msra.mxu0 0.0
        %324 = vmatpush.msra.mxu0 0.0
        %325 = vmatpush.msra.mxu0 0.0
        %326 = vmatpush.msra.mxu0 0.0
        %327 = vmatpush.msra.mxu0 0.0
        %328 = vmatpush.msra.mxu0 0.0
        %329 = vmatpush.msra.mxu0 0.0
        %330 = vmatpush.msra.mxu0 0.0
        %331 = vmatpush.msra.mxu0 0.0
        %332 = vmatpush.msra.mxu0 0.0
        %333 = vmatpush.msra.mxu0 0.0
        %334 = vmatpush.msra.mxu0 0.0
        %335 = vmatpush.msra.mxu0 %v320
        %336 = vmatpush.msra.mxu0 %v295
        %337 = vmatpush.msra.mxu0 %v294
        %338 = vmatmul.f32.gmra.mxu0 %v304
        %v339 = vpop.f32.mrf.mxu0
        %v340 = vadd.f32 0.0, %v339
        %341 = vmatmul.f32.gmra.mxu0 %v307
        %v342 = vpop.f32.mrf.mxu0
        %v343 = vadd.f32 0.0, %v342
        %344 = vmatmul.f32.gmra.mxu0 %v310
        %v345 = vpop.f32.mrf.mxu0
        %v346 = vadd.f32 0.0, %v345
        %347 = vmatmul.f32.gmra.mxu0 %v313
        %v348 = vpop.f32.mrf.mxu0
        %v349 = vadd.f32 0.0, %v348
        %350 = vmatmul.f32.gmra.mxu0 %v316
        %v351 = vpop.f32.mrf.mxu0
        %v352 = vadd.f32 0.0, %v351
        %353 = vdwg.mxu0
        %v354 = vld [vmem:[%s2 + $0x28] sm:$0xff]
        %v355 = vld [vmem:[%s2 + $0x30] sm:$0xff]
        %v356 = vld [vmem:[%s2 + $0x38] sm:$0xff]
        %v357 = vld [vmem:[%s2 + $0x40] sm:$0xff]
        %v358 = vld [vmem:[%s2 + $0x48] sm:$0xff]
        %v359 = vld [vmem:[%s2 + $0x50] sm:$0xff]
        %v360 = vld [vmem:[%s2 + $0x58] sm:$0xff]
        %v361 = vld [vmem:[%s2 + $0x60] sm:$0xff]
        %v363 = vsel %vm302, %v354, 0
        %v366 = vsel %vm302, %v355, 0
        %v369 = vsel %vm302, %v356, 0
        %v372 = vsel %vm302, %v357, 0
        %v375 = vsel %vm302, %v358, 0
        %v378 = vsel %vm302, %v359, 0
        %v381 = vsel %vm302, %v360, 0
        %v384 = vsel %vm302, %v361, 0
        %386 = vmatpush.msra.mxu0 0.0
        %387 = vmatpush.msra.mxu0 0.0
        %388 = vmatpush.msra.mxu0 0.0
        %389 = vmatpush.msra.mxu0 0.0
        %390 = vmatpush.msra.mxu0 0.0
        %391 = vmatpush.msra.mxu0 0.0
        %392 = vmatpush.msra.mxu0 0.0
        %393 = vmatpush.msra.mxu0 0.0
        %394 = vmatpush.msra.mxu0 0.0
        %395 = vmatpush.msra.mxu0 0.0
        %396 = vmatpush.msra.mxu0 0.0
        %397 = vmatpush.msra.mxu0 0.0
        %398 = vmatpush.msra.mxu0 0.0
        %399 = vmatpush.msra.mxu0 %v320
        %400 = vmatpush.msra.mxu0 %v295
        %401 = vmatpush.msra.mxu0 %v294
        %402 = vmatmul.f32.gmra.mxu0 %v363
        %v403 = vpop.f32.mrf.mxu0
        %v404 = vadd.f32 0.0, %v403
        %405 = vmatmul.f32.gmra.mxu0 %v366
        %v406 = vpop.f32.mrf.mxu0
        %v407 = vadd.f32 0.0, %v406
        %408 = vmatmul.f32.gmra.mxu0 %v369
        %v409 = vpop.f32.mrf.mxu0
        %v410 = vadd.f32 0.0, %v409
        %411 = vmatmul.f32.gmra.mxu0 %v372
        %v412 = vpop.f32.mrf.mxu0
        %v413 = vadd.f32 0.0, %v412
        %414 = vmatmul.f32.gmra.mxu0 %v375
        %v415 = vpop.f32.mrf.mxu0
        %v416 = vadd.f32 0.0, %v415
        %417 = vmatmul.f32.gmra.mxu0 %v378
        %v418 = vpop.f32.mrf.mxu0
        %v419 = vadd.f32 0.0, %v418
        %420 = vmatmul.f32.gmra.mxu0 %v381
        %v421 = vpop.f32.mrf.mxu0
        %v422 = vadd.f32 0.0, %v421
        %423 = vmatmul.f32.gmra.mxu0 %v384
        %v424 = vpop.f32.mrf.mxu0
        %v425 = vadd.f32 0.0, %v424
        %426 = vdwg.mxu0
        %v427 = vrcp.pop %v352
        %v428 = vmul.f32 %v352, %v427
        %v429 = vsub.f32 2.0, %v428
        %v430 = vmul.f32 %v427, %v429
        %v431 = vmul.f32 %v340, %v430
        %v432 = vmul.f32 %v343, %v430
        %v433 = vmul.f32 %v346, %v430
        %v434 = vld [vmem:[%s268] sm:$0xff]
        %v435 = vld [vmem:[%s268 + $0x8] sm:$0x1]
        %v437 = vrot.slane %v434, 5
        %v439 = vsub.f32 %v434, %v437
        %v440 = vsub.f32 %v435, %v437
        %v441 = vrot.slane %v434, 3
        %v443 = vsub.f32 %v434, %v441
        %v444 = vmul.f32 %v439, %v439
        %v446 = vrot.slane %v444, 1
        %v448 = vadd.f32 %v444, %v446
        %v449 = vmul.f32 %v440, %v440
        %v451 = vrot.slane %v449, 2
        %v453 = vadd.f32 %v448, %v451
        %v454 = vrsqrt.pop %v453
        %v455 = vmul.f32 %v454, %v453
        %v456 = vmul.f32 %v455, %v454
        %v457 = vmul.f32 0.5, %v456
        %v458 = vsub.f32 1.5, %v457
        %v459 = vmul.f32 %v454, %v458
        %v460 = vmul.f32 %v453, %v459
        %vm461 = vcmp.eq.f32.partialorder %v453, inf
        %v462 = vsel %vm461, %v453, %v460
        %vm463 = vcmp.eq.f32.partialorder %v453, 0.0
        %v464 = vand.u32 %v453, 2147483648
        %v465 = vsel %vm463, %v464, %v462
        %v466 = vadd.f32 %v465, 1e-08
        %v467 = vrcp.pop %v466
        %v468 = vmul.f32 %v466, %v467
        %v469 = vsub.f32 2.0, %v468
        %v470 = vmul.f32 %v467, %v469
        %v471 = vmul.f32 %v439, %v470
        %v473 = vrot.slane %v470, 7
        %v475 = vmul.f32 %v439, %v473
        %v476 = vrot.slane %v470, 6
        %v478 = vmul.f32 %v440, %v476
        %v480 = vrot.slane %v443, 2
        %v482 = vmul.f32 %v471, %v480
        %v483 = vmul.f32 %v475, %v480
        %v485 = vrot.slane %v483, 1
        %v487 = vadd.f32 %v482, %v485
        %v488 = vmul.f32 %v478, %v480
        %v490 = vrot.slane %v488, 2
        %v492 = vadd.f32 %v487, %v490
        %v493 = vmul.f32 %v492, %v471
        %v495 = vrot.slane %v493, 6
        %v497 = vsub.f32 %v443, %v495
        %v499 = vrot.slane %v475, 1
        %v501 = vmul.f32 %v492, %v499
        %v503 = vrot.slane %v501, 5
        %v505 = vsub.f32 %v443, %v503
        %v507 = vrot.slane %v478, 2
        %v509 = vmul.f32 %v492, %v507
        %v511 = vrot.slane %v509, 4
        %v513 = vsub.f32 %v443, %v511
        %v514 = vmul.f32 %v497, %v497
        %v515 = vmul.f32 %v505, %v505
        %v517 = vrot.slane %v515, 1
        %v519 = vadd.f32 %v514, %v517
        %v520 = vmul.f32 %v513, %v513
        %v522 = vrot.slane %v520, 2
        %v524 = vadd.f32 %v519, %v522
        %v525 = vrsqrt.pop %v524
        %v526 = vmul.f32 %v525, %v524
        %v527 = vmul.f32 %v526, %v525
        %v528 = vmul.f32 0.5, %v527
        %v529 = vsub.f32 1.5, %v528
        %v530 = vmul.f32 %v525, %v529
        %v531 = vmul.f32 %v524, %v530
        %vm532 = vcmp.eq.f32.partialorder %v524, inf
        %v533 = vsel %vm532, %v524, %v531
        %vm534 = vcmp.eq.f32.partialorder %v524, 0.0
        %v535 = vand.u32 %v524, 2147483648
        %v536 = vsel %vm534, %v535, %v533
        %v537 = vadd.f32 %v536, 1e-08
        %v538 = vrcp.pop %v537
        %v539 = vmul.f32 %v537, %v538
        %v540 = vsub.f32 2.0, %v539
        %v541 = vmul.f32 %v538, %v540
        %v542 = vmul.f32 %v497, %v541
        %v544 = vrot.slane %v541, 7
        %v546 = vmul.f32 %v505, %v544
        %v547 = vrot.slane %v541, 6
        %v549 = vmul.f32 %v513, %v547
        %v551 = vrot.slane %v549, 3
        %v553 = vmul.f32 %v475, %v551
        %v555 = vrot.slane %v546, 1
        %v557 = vmul.f32 %v478, %v555
        %v559 = vrot.slane %v557, 1
        %v561 = vsub.f32 %v553, %v559
        %v562 = vmul.f32 %v478, %v542
        %v563 = vrot.slane %v549, 4
        %v565 = vmul.f32 %v471, %v563
        %v567 = vrot.slane %v565, 6
        %v569 = vsub.f32 %v562, %v567
        %v570 = vrot.slane %v546, 3
        %v572 = vmul.f32 %v471, %v570
        %v574 = vrot.slane %v542, 1
        %v576 = vmul.f32 %v475, %v574
        %v578 = vrot.slane %v576, 1
        %v580 = vsub.f32 %v572, %v578
        %v581 = vperm.slane %v471, 6
        %v582 = vmul.f32 %v431, %v581
        %v583 = vperm.slane %v542, 0
        %v584 = vmul.f32 %v432, %v583
        %v585 = vadd.f32 %v582, %v584
        %v586 = vperm.slane %v561, 7
        %v587 = vmul.f32 %v433, %v586
        %v588 = vadd.f32 %v585, %v587
        %v589 = vperm.slane %v434, 3
        %v590 = vadd.f32 %v588, %v589
        %591 = vst [vmem:[%s293] sm:$0xff] %v590
        %v592 = vperm.slane %v475, 7
        %v593 = vmul.f32 %v431, %v592
        %v594 = vperm.slane %v546, 1
        %v595 = vmul.f32 %v432, %v594
        %v596 = vadd.f32 %v593, %v595
        %v597 = vperm.slane %v569, 0
        %v598 = vmul.f32 %v433, %v597
        %v599 = vadd.f32 %v596, %v598
        %v600 = vperm.slane %v434, 4
        %v601 = vadd.f32 %v599, %v600
        %602 = vst [vmem:[%s293 + $0x8] sm:$0xff] %v601
        %v603 = vperm.slane %v478, 0
        %v604 = vmul.f32 %v431, %v603
        %v605 = vperm.slane %v549, 2
        %v606 = vmul.f32 %v432, %v605
        %v607 = vadd.f32 %v604, %v606
        %v608 = vperm.slane %v580, 6
        %v609 = vmul.f32 %v433, %v608
        %v610 = vadd.f32 %v607, %v609
        %v611 = vperm.slane %v434, 5
        %v612 = vadd.f32 %v610, %v611
        %613 = vst [vmem:[%s293 + $0x10] sm:$0xff] %v612
        %v614 = vmul.f32 %v349, %v430
        %615 = vst [vmem:[%s293 + $0x18] sm:$0xff] %v614
        %616 = vst [vmem:[%s293 + $0x20] sm:$0xff] %v352
        %v617 = vld [vmem:[%s3] sm:$0xff]
        %v618 = vld [vmem:[%s3 + $0x8] sm:$0xff]
        %v619 = vld [vmem:[%s3 + $0x10] sm:$0xff]
        %v620 = vld [vmem:[%s3 + $0x18] sm:$0xff]
        %v621 = vld [vmem:[%s3 + $0x20] sm:$0xff]
        %v622 = vld [vmem:[%s3 + $0x28] sm:$0xff]
        %v623 = vld [vmem:[%s3 + $0x30] sm:$0xff]
        %v624 = vld [vmem:[%s3 + $0x38] sm:$0xff]
        %vm625 = vcmask 64512
        %v627 = vsel %vm625, %v617, 0
        %v630 = vsel %vm625, %v618, 0
        %v633 = vsel %vm625, %v619, 0
        %v636 = vsel %vm625, %v620, 0
        %v639 = vsel %vm625, %v621, 0
        %v642 = vsel %vm625, %v622, 0
        %v645 = vsel %vm625, %v623, 0
        %v648 = vsel %vm625, %v624, 0
        %650 = vmatpush.msra.mxu0 0.0
        %651 = vmatpush.msra.mxu0 0.0
        %652 = vmatpush.msra.mxu0 0.0
        %653 = vmatpush.msra.mxu0 0.0
        %654 = vmatpush.msra.mxu0 0.0
        %655 = vmatpush.msra.mxu0 0.0
        %656 = vmatpush.msra.mxu0 0.0
        %657 = vmatpush.msra.mxu0 0.0
        %658 = vmatpush.msra.mxu0 0.0
        %659 = vmatpush.msra.mxu0 0.0
        %660 = vmatpush.msra.mxu0 0.0
        %661 = vmatpush.msra.mxu0 0.0
        %662 = vmatpush.msra.mxu0 0.0
        %663 = vmatpush.msra.mxu0 0.0
        %664 = vmatpush.msra.mxu0 0.0
        %665 = vmatpush.msra.mxu0 %v430
        %666 = vmatmul.f32.gmra.mxu0 %v627
        %v667 = vpop.f32.mrf.mxu0
        %v668 = vadd.f32 0.0, %v667
        %669 = vmatmul.f32.gmra.mxu0 %v630
        %v670 = vpop.f32.mrf.mxu0
        %v671 = vadd.f32 0.0, %v670
        %672 = vmatmul.f32.gmra.mxu0 %v633
        %v673 = vpop.f32.mrf.mxu0
        %v674 = vadd.f32 0.0, %v673
        %675 = vmatmul.f32.gmra.mxu0 %v636
        %v676 = vpop.f32.mrf.mxu0
        %v677 = vadd.f32 0.0, %v676
        %678 = vmatmul.f32.gmra.mxu0 %v639
        %v679 = vpop.f32.mrf.mxu0
        %v680 = vadd.f32 0.0, %v679
        %681 = vmatmul.f32.gmra.mxu0 %v642
        %v682 = vpop.f32.mrf.mxu0
        %v683 = vadd.f32 0.0, %v682
        %684 = vmatmul.f32.gmra.mxu0 %v645
        %v685 = vpop.f32.mrf.mxu0
        %v686 = vadd.f32 0.0, %v685
        %687 = vmatmul.f32.gmra.mxu0 %v648
        %v688 = vpop.f32.mrf.mxu0
        %v689 = vadd.f32 0.0, %v688
        %690 = vdwg.mxu0
        %v691 = vmul.f32 %v404, %v668
        %v692 = vmul.f32 %v407, %v671
        %v693 = vmul.f32 %v410, %v674
        %v694 = vmul.f32 %v413, %v677
        %v695 = vmul.f32 %v416, %v680
        %v696 = vmul.f32 %v419, %v683
        %v697 = vmul.f32 %v422, %v686
        %v698 = vmul.f32 %v425, %v689
        %699 = vst [vmem:[%s293 + $0x28] sm:$0xff] %v691
        %700 = vst [vmem:[%s293 + $0x30] sm:$0xff] %v692
        %701 = vst [vmem:[%s293 + $0x38] sm:$0xff] %v693
        %702 = vst [vmem:[%s293 + $0x40] sm:$0xff] %v694
        %703 = vst [vmem:[%s293 + $0x48] sm:$0xff] %v695
        %704 = vst [vmem:[%s293 + $0x50] sm:$0xff] %v696
        %705 = vst [vmem:[%s293 + $0x58] sm:$0xff] %v697
        %706 = vst [vmem:[%s293 + $0x60] sm:$0xff] %v698
        %s707 = sand.u32 %s117, 1
        %s708 = sand.u32 %s117, 1
        %s709 = smul.addr %s708, 104
        %s710 = scalar_lea.vmem [#allocation4], %s709
        // Predicated region
        $region113: #{_bb2martini_core.1} parent=103 // pred_check
          %p711 = pneg %p127
        $region114: #{_bb2martini_core.1} parent=103 // pred_check_branch
          %713 = sbr.rel (%p711) target = $region116
        $region115: #{_bb2martini_core.1} parent=103 // pred_region
          %s714 = smul.addr %s15, 8
          %s715 = scalar_lea.vmem %s4, %s714
          // Predicated region
          $region117: #{_bb2martini_core.1} parent=115 // pred_check
            _
          $region118: #{_bb2martini_core.1} parent=115 // pred_check_branch
            %717 = sbr.rel (0) target = $region120
          $region119: #{_bb2martini_core.1} parent=115 // pred_region
            // Predicated region
            $region121: #{_bb2martini_core.1} parent=119 // pred_check
              _
            $region122: #{_bb2martini_core.1} parent=119 // pred_check_branch
              %719 = sbr.rel (0) target = $region124
            $region123: #{_bb2martini_core.1} parent=119 // pred_region
              // Predicated region
              $region136: #{_bb2martini_core.1} parent=123 // pred_check
                _
              $region137: #{_bb2martini_core.1} parent=123 // pred_check_branch
                %759 = sbr.rel (0) target = $region139
              $region138: #{_bb2martini_core.1} parent=123 // pred_region
                loop: start=0, step=1, limit=1
                $region140: #{_bb2martini_core.1} parent=138 // loop_pre_header
                  _
                $region141: #{_bb2martini_core.1} parent=138 // loop_header
                  %s761 = sphi 0, %s765
                  %p762 = scmp.ge.s32.totalorder %s761, 1
                  %s766 = sphi %s710, %s710
                  %s767 = sphi %s715, %s715
                $region142: #{_bb2martini_core.1} parent=138 // loop_header_branch
                  %764 = sbr.rel (%p762) target = $region146
                $region143: #{_bb2martini_core.1} parent=138 // loop_body
                  %v768 = vld [vmem:[%s766] sm:$0xff]
                  %769 = vst [vmem:[%s767] sm:$0xff] %v768
                  %v770 = vld [vmem:[%s766 + $0x8] sm:$0xff]
                  %771 = vst [vmem:[%s767 + $0x10] sm:$0xff] %v770
                  %v772 = vld [vmem:[%s766 + $0x10] sm:$0xff]
                  %773 = vst [vmem:[%s767 + $0x20] sm:$0xff] %v772
                  %v774 = vld [vmem:[%s766 + $0x18] sm:$0xff]
                  %775 = vst [vmem:[%s767 + $0x30] sm:$0xff] %v774
                  %v776 = vld [vmem:[%s766 + $0x20] sm:$0xff]
                  %777 = vst [vmem:[%s767 + $0x40] sm:$0xff] %v776
                  %v778 = vld [vmem:[%s766 + $0x28] sm:$0xff]
                  %779 = vst [vmem:[%s767 + $0x50] sm:$0xff] %v778
                  %v780 = vld [vmem:[%s766 + $0x30] sm:$0xff]
                  %781 = vst [vmem:[%s767 + $0x60] sm:$0xff] %v780
                  %v782 = vld [vmem:[%s766 + $0x38] sm:$0xff]
                  %783 = vst [vmem:[%s767 + $0x70] sm:$0xff] %v782
                  %v784 = vld [vmem:[%s766 + $0x40] sm:$0xff]
                  %785 = vst [vmem:[%s767 + $0x80] sm:$0xff] %v784
                  %v786 = vld [vmem:[%s766 + $0x48] sm:$0xff]
                  %787 = vst [vmem:[%s767 + $0x90] sm:$0xff] %v786
                  %v788 = vld [vmem:[%s766 + $0x50] sm:$0xff]
                  %789 = vst [vmem:[%s767 + $0xa0] sm:$0xff] %v788
                  %v790 = vld [vmem:[%s766 + $0x58] sm:$0xff]
                  %791 = vst [vmem:[%s767 + $0xb0] sm:$0xff] %v790
                  %v792 = vld [vmem:[%s766 + $0x60] sm:$0xff]
                  %793 = vst [vmem:[%s767 + $0xc0] sm:$0xff] %v792
                $region144: #{_bb2martini_core.1} parent=138 // loop_footer
                  %s765 = sadd.s32 1, %s761
                $region145: #{_bb2martini_core.1} parent=138 // loop_footer_branch
                  %760 = sbr.rel target = $region141
                $region146: #{_bb2martini_core.1} parent=138 // loop_exit
                  _
              $region139: #{_bb2martini_core.1} parent=123 // pred_fallthru
                _
              // Predicated region
              $region147: #{_bb2martini_core.1} parent=123 // pred_check
                _
              $region148: #{_bb2martini_core.1} parent=123 // pred_check_branch
                %795 = sbr.rel target = $region150
              $region149: #{_bb2martini_core.1} parent=123 // pred_region
                _
              $region150: #{_bb2martini_core.1} parent=123 // pred_fallthru
                _
            $region124: #{_bb2martini_core.1} parent=119 // pred_fallthru
              _
            // Predicated region
            $region125: #{_bb2martini_core.1} parent=119 // pred_check
              _
            $region126: #{_bb2martini_core.1} parent=119 // pred_check_branch
              %721 = sbr.rel target = $region128
            $region127: #{_bb2martini_core.1} parent=119 // pred_region
              %s723 = ssub.s32 256, 1
              loop: start=0, step=1, limit=1
              $region129: #{_bb2martini_core.1} parent=127 // loop_pre_header
                _
              $region130: #{_bb2martini_core.1} parent=127 // loop_header
                %s725 = sphi 0, %s729
                %p726 = scmp.ge.s32.totalorder %s725, 1
                %s730 = sphi %s710, %s710
                %s731 = sphi %s715, %s715
              $region131: #{_bb2martini_core.1} parent=127 // loop_header_branch
                %728 = sbr.rel (%p726) target = $region135
              $region132: #{_bb2martini_core.1} parent=127 // loop_body
                %v732 = vld [vmem:[%s730] sm:%s723]
                %733 = vst [vmem:[%s731] sm:%s723] %v732
                %v734 = vld [vmem:[%s730 + $0x8] sm:%s723]
                %735 = vst [vmem:[%s731 + $0x10] sm:%s723] %v734
                %v736 = vld [vmem:[%s730 + $0x10] sm:%s723]
                %737 = vst [vmem:[%s731 + $0x20] sm:%s723] %v736
                %v738 = vld [vmem:[%s730 + $0x18] sm:%s723]
                %739 = vst [vmem:[%s731 + $0x30] sm:%s723] %v738
                %v740 = vld [vmem:[%s730 + $0x20] sm:%s723]
                %741 = vst [vmem:[%s731 + $0x40] sm:%s723] %v740
                %v742 = vld [vmem:[%s730 + $0x28] sm:%s723]
                %743 = vst [vmem:[%s731 + $0x50] sm:%s723] %v742
                %v744 = vld [vmem:[%s730 + $0x30] sm:%s723]
                %745 = vst [vmem:[%s731 + $0x60] sm:%s723] %v744
                %v746 = vld [vmem:[%s730 + $0x38] sm:%s723]
                %747 = vst [vmem:[%s731 + $0x70] sm:%s723] %v746
                %v748 = vld [vmem:[%s730 + $0x40] sm:%s723]
                %749 = vst [vmem:[%s731 + $0x80] sm:%s723] %v748
                %v750 = vld [vmem:[%s730 + $0x48] sm:%s723]
                %751 = vst [vmem:[%s731 + $0x90] sm:%s723] %v750
                %v752 = vld [vmem:[%s730 + $0x50] sm:%s723]
                %753 = vst [vmem:[%s731 + $0xa0] sm:%s723] %v752
                %v754 = vld [vmem:[%s730 + $0x58] sm:%s723]
                %755 = vst [vmem:[%s731 + $0xb0] sm:%s723] %v754
                %v756 = vld [vmem:[%s730 + $0x60] sm:%s723]
                %757 = vst [vmem:[%s731 + $0xc0] sm:%s723] %v756
              $region133: #{_bb2martini_core.1} parent=127 // loop_footer
                %s729 = sadd.s32 1, %s725
              $region134: #{_bb2martini_core.1} parent=127 // loop_footer_branch
                %724 = sbr.rel target = $region130
              $region135: #{_bb2martini_core.1} parent=127 // loop_exit
                _
            $region128: #{_bb2martini_core.1} parent=119 // pred_fallthru
              _
          $region120: #{_bb2martini_core.1} parent=115 // pred_fallthru
            _
          %796 = vnop
        $region116: #{_bb2martini_core.1} parent=103 // pred_fallthru
          _
      $region104: #{_bb2martini_core.1} parent=5 // pred_fallthru
        _
      %p797 = scmp.le.s32.totalorder 2, %s10
      // Predicated region
      $region151: #{_bb2martini_core.1} parent=5 // pred_check
        %p798 = pneg %p797
      $region152: #{_bb2martini_core.1} parent=5 // pred_check_branch
        %800 = sbr.rel (%p798) target = $region154
      $region153: #{_bb2martini_core.1} parent=5 // pred_region
        %s801 = ssub.s32 %s10, 2
        // Predicated region
        $region155: #{_bb2martini_core.1} parent=153 // pred_check
          %p802 = pneg %p133
        $region156: #{_bb2martini_core.1} parent=153 // pred_check_branch
          %804 = sbr.rel (%p802) target = $region158
        $region157: #{_bb2martini_core.1} parent=153 // pred_region
          %s805 = sand.u32 %s118, 1
          %s806 = sand.u32 %s118, 1
          %s807 = smul.addr %s806, 104
          %s808 = scalar_lea.vmem [#allocation4], %s807
        $region158: #{_bb2martini_core.1} parent=153 // pred_fallthru
          _
      $region154: #{_bb2martini_core.1} parent=5 // pred_fallthru
        _
    $region6: #{_bb2martini_core.1} parent=1 // loop_footer
      %s14 = sadd.s32 1, %s10
    $region7: #{_bb2martini_core.1} parent=1 // loop_footer_branch
      %9 = sbr.rel target = $region3
    $region8: #{_bb2martini_core.1} parent=1 // loop_exit
      _

</llo_original>
